<compile_context>
chip_gen: v6e
topology: v6e:2x2x1
jax: 0.10.0
libtpu: 0.0.40
codegen_flags: <defaults>
</compile_context>

<pallas_src>
import math

import jax
import jax.numpy as jnp
from jax.experimental import pallas as pl
from jax.experimental.pallas import tpu as pltpu

LANE = 128      # lane width (last dim)
SUBLANE = 8     # sublane width (second-to-last dim)


def _round_up(n, m):
    return ((n + m - 1) // m) * m


# ---------------------------------------------------------------------------
# Parameter prep (one-time, amortized over all invocations)
# ---------------------------------------------------------------------------
def prepare_params(W, U, bias_ih, bias_hh, *, compute_dtype=jnp.float32):
    """Pre-transpose W/U, fold the biases, zero-pad everything lane-dense.

    Zero padding is exact: padded contraction rows contribute nothing, padded
    output rows/columns are sliced off outside, and padded hidden columns stay
    exactly zero through the recurrence (tanh(0 + 0) == 0).
    """
    H, I = W.shape
    Ip, Hp = _round_up(I, LANE), _round_up(H, LANE)
    Wx = jnp.pad(W.T, ((0, Ip - I), (0, Hp - H))).astype(compute_dtype)   # (Ip, Hp)
    Wh = jnp.pad(U.T, ((0, Hp - H), (0, Hp - H))).astype(compute_dtype)   # (Hp, Hp)
    bias = jnp.pad((bias_ih + bias_hh).reshape(1, H),
                   ((0, 0), (0, Hp - H))).astype(jnp.float32)             # (1, Hp)
    return Wx, Wh, bias


# ---------------------------------------------------------------------------
# Kernels
# ---------------------------------------------------------------------------
def _xproj_kernel(x_ref, wx_ref, b_ref, o_ref):
    # Parallel phase: one timestep's input projection x_t @ Wx + bias.
    # Weights/bias have constant index_maps -> DMA'd once, stay resident.
    o_ref[0] = (
        jnp.dot(x_ref[0], wx_ref[...], preferred_element_type=jnp.float32)
        + b_ref[...]                                  # (1, Hp) broadcast
    ).astype(o_ref.dtype)


def _recurrent_kernel(xproj_ref, wh_ref, h0_ref, o_ref, h_scr):
    # Serial phase: h_t = tanh(xproj_t + h_{t-1} @ Wh), h carried in VMEM scratch.
    t = pl.program_id(0)

    @pl.when(t == 0)
    def _():
        h_scr[...] = h0_ref[...].astype(jnp.float32)

    h = h_scr[...]
    acc = jnp.dot(h.astype(wh_ref.dtype), wh_ref[...],
                  preferred_element_type=jnp.float32)
    h_new = jnp.tanh(xproj_ref[0] + acc)      # f32 VPU add + EUP tanh (v5e-safe)
    h_scr[...] = h_new
    o_ref[0] = h_new.astype(o_ref.dtype)      # lane-dense (Bp, Hp) unmasked store


# ---------------------------------------------------------------------------
# Wrappers
# ---------------------------------------------------------------------------
def rnn_sequence_forward(xs, h0, Wx, Wh, bias):
    """Apply the RNN cell over a sequence.  xs: (T, B, I), h0: (B, H).

    Returns all hidden states, shape (T, B, H).  The time loop runs inside the
    recurrent kernel; padding / slicing happens once per sequence, not per step.
    """
    T, B, I = xs.shape
    H = h0.shape[1]
    Ip, Hp = Wx.shape
    Bp = _round_up(B, SUBLANE)
    f32 = jnp.float32
    itemsize = lambda a: a.size * jnp.dtype(a.dtype).itemsize

    # Pad the whole sequence / initial hidden once.
    xs_pad = jnp.pad(xs, ((0, 0), (0, Bp - B), (0, Ip - I))).astype(Wx.dtype)
    h0_pad = jnp.pad(h0, ((0, Bp - B), (0, Hp - H))).astype(f32)

    step3 = lambda t: (t, 0, 0)
    const2 = lambda t: (0, 0)

    # Phase 1 ("parallel" over T): X_proj = X @ Wx + bias for all timesteps.
    xproj = pl.pallas_call(
        _xproj_kernel,
        out_shape=jax.ShapeDtypeStruct((T, Bp, Hp), f32),
        grid=(T,),
        in_specs=[
            pl.BlockSpec((1, Bp, Ip), step3),
            pl.BlockSpec((Ip, Hp), const2),    # resident input weights
            pl.BlockSpec((1, Hp), const2),     # resident folded bias
        ],
        out_specs=pl.BlockSpec((1, Bp, Hp), step3),
        compiler_params=pltpu.CompilerParams(
            dimension_semantics=("parallel",),
            vmem_limit_bytes=32 * 1024 * 1024,
        ),
        cost_estimate=pl.CostEstimate(
            flops=2 * T * Bp * Ip * Hp,
            transcendentals=0,
            bytes_accessed=itemsize(xs_pad) + itemsize(Wx) + itemsize(bias)
                           + T * Bp * Hp * 4,
        ),
    )(xs_pad, Wx, bias)

    # Phase 2 ("arbitrary" over T, in order): the recurrence itself.
    h_seq = pl.pallas_call(
        _recurrent_kernel,
        out_shape=jax.ShapeDtypeStruct((T, Bp, Hp), xs.dtype),
        grid=(T,),
        in_specs=[
            pl.BlockSpec((1, Bp, Hp), step3),
            pl.BlockSpec((Hp, Hp), const2),    # resident recurrent weights
            pl.BlockSpec((Bp, Hp), const2),    # resident initial hidden
        ],
        out_specs=pl.BlockSpec((1, Bp, Hp), step3),
        scratch_shapes=[pltpu.VMEM((Bp, Hp), jnp.float32)],   # h carry
        compiler_params=pltpu.CompilerParams(
            dimension_semantics=("arbitrary",),
            vmem_limit_bytes=32 * 1024 * 1024,
        ),
        cost_estimate=pl.CostEstimate(
            flops=2 * T * Bp * Hp * Hp,
            transcendentals=T * Bp * Hp,
            bytes_accessed=T * Bp * Hp * 4 + itemsize(Wh) + Bp * Hp * 4
                           + T * Bp * Hp * jnp.dtype(xs.dtype).itemsize,
        ),
    )(xproj, Wh, h0_pad)

    # Slice padding off once for the whole sequence.
    return h_seq[:, :B, :H]


def rnn_cell_forward(x, h, Wx, Wh, bias):
    """The module's forward (single cell step): h' = tanh(x@W^T + b_ih + h@U^T + b_hh)."""
    return rnn_sequence_forward(x[None], h, Wx, Wh, bias)[0]


def reference_step(x, h, W, U, bias_ih, bias_hh):
    return jnp.tanh(x @ W.T + bias_ih + h @ U.T + bias_hh)


# ---------------------------------------------------------------------------
if __name__ == "__main__":
    batch, input_size, hidden_size, seq_len = 8, 16, 32, 8

    key = jax.random.PRNGKey(0)
    kx, kxs, kh, kw, ku, kbi, kbh = jax.random.split(key, 7)

    # Deterministic init matching init_weights(): U(-std, std), std = 1/sqrt(H)
    std = 1.0 / math.sqrt(hidden_size)
    W = jax.random.uniform(kw, (hidden_size, input_size), jnp.float32, -std, std)
    U = jax.random.uniform(ku, (hidden_size, hidden_size), jnp.float32, -std, std)
    bias_ih = jax.random.uniform(kbi, (hidden_size,), jnp.float32, -std, std)
    bias_hh = jax.random.uniform(kbh, (hidden_size,), jnp.float32, -std, std)

    x = jax.random.normal(kx, (batch, input_size), jnp.float32)
    h0 = jax.random.normal(kh, (batch, hidden_size), jnp.float32)
    xs = jax.random.normal(kxs, (seq_len, batch, input_size), jnp.float32)

    # One-time parameter prep (pre-transpose, fold biases, pad lane-dense).
    Wx, Wh, bias = prepare_params(W, U, bias_ih, bias_hh)

    cell_fwd = jax.jit(rnn_cell_forward)
    seq_fwd = jax.jit(rnn_sequence_forward)

    # --- single-step forward: exactly the module's forward(input, hidden) ---
    h1 = jax.block_until_ready(cell_fwd(x, h0, Wx, Wh, bias))
    ref1 = reference_step(x, h0, W, U, bias_ih, bias_hh)
    assert h1.shape == (batch, hidden_size)
    assert jnp.allclose(h1, ref1, atol=1e-5, rtol=1e-5)

    # --- multi-step: time loop fused inside the recurrent kernel ---
    hs = jax.block_until_ready(seq_fwd(xs, h0, Wx, Wh, bias))
    assert hs.shape == (seq_len, batch, hidden_size)
    h_ref = h0
    for t in range(seq_len):
        h_ref = reference_step(xs[t], h_ref, W, U, bias_ih, bias_hh)
        assert jnp.allclose(hs[t], h_ref, atol=1e-5, rtol=1e-5)

    print("KERNEL_OK")
</pallas_src>

<mosaic_0001>
module attributes {stable_mosaic.version = 11 : i64} {
  func.func @_recurrent_kernel(%arg0: i32, %arg1: memref<1x8x128xf32, #tpu.memory_space<vmem>>, %arg2: memref<128x128xf32, #tpu.memory_space<vmem>>, %arg3: memref<8x128xf32, #tpu.memory_space<vmem>>, %arg4: memref<1x8x128xf32, #tpu.memory_space<vmem>>, %arg5: memref<8x128xf32, #tpu.memory_space<vmem>>) attributes {dimension_semantics = [#tpu.dimension_semantics<arbitrary>], iteration_bounds = array<i64: 1>, scalar_prefetch = 0 : i64, scratch_operands = 1 : i64, tpu.core_type = #tpu.core_type<tc>, window_params = [{transform_indices = @transform_0, window_bounds = array<i64: 1, 8, 128>}, {pipeline_mode = #tpu.pipeline_mode<synchronous>, transform_indices = @transform_1, window_bounds = array<i64: 128, 128>}, {pipeline_mode = #tpu.pipeline_mode<synchronous>, transform_indices = @transform_2, window_bounds = array<i64: 8, 128>}, {transform_indices = @transform_3, window_bounds = array<i64: 1, 8, 128>}]} {
    %c0_i32 = arith.constant 0 : i32
    %0 = arith.cmpi eq, %arg0, %c0_i32 : i32
    %1 = arith.extui %0 : i1 to i32
    %c0_i32_0 = arith.constant 0 : i32
    %2 = arith.cmpi ne, %1, %c0_i32_0 : i32
    scf.if %2 {
      %c0_12 = arith.constant 0 : index
      %c0_13 = arith.constant 0 : index
      %14 = vector.load %arg3[%c0_12, %c0_13] : memref<8x128xf32, #tpu.memory_space<vmem>>, vector<8x128xf32>
      %c0_14 = arith.constant 0 : index
      %c0_15 = arith.constant 0 : index
      %15 = vector.load %arg5[%c0_14, %c0_15] : memref<8x128xf32, #tpu.memory_space<vmem>>, vector<8x128xf32>
      tpu.vector_store %arg5[%c0_14, %c0_15], %14 {strides = array<i32>} : memref<8x128xf32, #tpu.memory_space<vmem>>, vector<8x128xf32>,
    } else {
    }
    %c0 = arith.constant 0 : index
    %c0_1 = arith.constant 0 : index
    %3 = vector.load %arg5[%c0, %c0_1] : memref<8x128xf32, #tpu.memory_space<vmem>>, vector<8x128xf32>
    %c0_2 = arith.constant 0 : index
    %c0_3 = arith.constant 0 : index
    %4 = vector.load %arg2[%c0_2, %c0_3] : memref<128x128xf32, #tpu.memory_space<vmem>>, vector<128x128xf32>
    %cst = arith.constant dense<0.000000e+00> : vector<8x128xf32>
    %5 = tpu.matmul %3, %4, %cst {dimension_numbers = #tpu.dot_dimension_numbers<[1], [0], [0], [1], [0, 0, 1, 1], [], []>} : vector<8x128xf32>, vector<128x128xf32>, vector<8x128xf32> -> vector<8x128xf32>
    %c0_4 = arith.constant 0 : index
    %c0_5 = arith.constant 0 : index
    %c0_6 = arith.constant 0 : index
    %6 = vector.load %arg1[%c0_4, %c0_5, %c0_6] : memref<1x8x128xf32, #tpu.memory_space<vmem>>, vector<1x8x128xf32>
    %7 = vector.shape_cast %6 : vector<1x8x128xf32> to vector<8x128xf32>
    %8 = arith.addf %7, %5 : vector<8x128xf32>
    %9 = math.tanh %8 : vector<8x128xf32>
    %c0_7 = arith.constant 0 : index
    %c0_8 = arith.constant 0 : index
    %10 = vector.load %arg5[%c0_7, %c0_8] : memref<8x128xf32, #tpu.memory_space<vmem>>, vector<8x128xf32>
    tpu.vector_store %arg5[%c0_7, %c0_8], %9 {strides = array<i32>} : memref<8x128xf32, #tpu.memory_space<vmem>>, vector<8x128xf32>,
    %c0_9 = arith.constant 0 : index
    %c0_10 = arith.constant 0 : index
    %c0_11 = arith.constant 0 : index
    %11 = vector.load %arg4[%c0_9, %c0_10, %c0_11] : memref<1x8x128xf32, #tpu.memory_space<vmem>>, vector<1x8x128xf32>
    %12 = vector.shape_cast %11 : vector<1x8x128xf32> to vector<8x128xf32>
    %13 = vector.shape_cast %9 : vector<8x128xf32> to vector<1x8x128xf32>
    tpu.vector_store %arg4[%c0_9, %c0_10, %c0_11], %13 {strides = array<i32>} : memref<1x8x128xf32, #tpu.memory_space<vmem>>, vector<1x8x128xf32>,
    return
  }
  func.func @transform_0(%arg0: i32) -> (i32, i32, i32) {
    %c0_i32 = arith.constant 0 : i32
    %c0_i32_0 = arith.constant 0 : i32
    %c0_i32_1 = arith.constant 0 : i32
    return %arg0, %c0_i32, %c0_i32_0 : i32, i32, i32
  }
  func.func @transform_1(%arg0: i32) -> (i32, i32) {
    %c0_i32 = arith.constant 0 : i32
    %c0_i32_0 = arith.constant 0 : i32
    %c0_i32_1 = arith.constant 0 : i32
    return %c0_i32, %c0_i32_0 : i32, i32
  }
  func.func @transform_2(%arg0: i32) -> (i32, i32) {
    %c0_i32 = arith.constant 0 : i32
    %c0_i32_0 = arith.constant 0 : i32
    %c0_i32_1 = arith.constant 0 : i32
    return %c0_i32, %c0_i32_0 : i32, i32
  }
  func.func @transform_3(%arg0: i32) -> (i32, i32, i32) {
    %c0_i32 = arith.constant 0 : i32
    %c0_i32_0 = arith.constant 0 : i32
    %c0_i32_1 = arith.constant 0 : i32
    return %arg0, %c0_i32, %c0_i32_0 : i32, i32, i32
  }
}

module attributes {stable_mosaic.version = 11 : i64} {
  func.func @_xproj_kernel(%arg0: i32, %arg1: memref<1x8x128xf32, #tpu.memory_space<vmem>>, %arg2: memref<128x128xf32, #tpu.memory_space<vmem>>, %arg3: memref<1x128xf32, #tpu.memory_space<vmem>>, %arg4: memref<1x8x128xf32, #tpu.memory_space<vmem>>) attributes {dimension_semantics = [#tpu.dimension_semantics<parallel>], iteration_bounds = array<i64: 1>, scalar_prefetch = 0 : i64, scratch_operands = 0 : i64, tpu.core_type = #tpu.core_type<tc>, window_params = [{transform_indices = @transform_0, window_bounds = array<i64: 1, 8, 128>}, {pipeline_mode = #tpu.pipeline_mode<synchronous>, transform_indices = @transform_1, window_bounds = array<i64: 128, 128>}, {pipeline_mode = #tpu.pipeline_mode<synchronous>, transform_indices = @transform_2, window_bounds = array<i64: 1, 128>}, {transform_indices = @transform_3, window_bounds = array<i64: 1, 8, 128>}]} {
    %c0 = arith.constant 0 : index
    %c0_0 = arith.constant 0 : index
    %c0_1 = arith.constant 0 : index
    %0 = vector.load %arg1[%c0, %c0_0, %c0_1] : memref<1x8x128xf32, #tpu.memory_space<vmem>>, vector<1x8x128xf32>
    %1 = vector.shape_cast %0 : vector<1x8x128xf32> to vector<8x128xf32>
    %c0_2 = arith.constant 0 : index
    %c0_3 = arith.constant 0 : index
    %2 = vector.load %arg2[%c0_2, %c0_3] : memref<128x128xf32, #tpu.memory_space<vmem>>, vector<128x128xf32>
    %cst = arith.constant dense<0.000000e+00> : vector<8x128xf32>
    %3 = tpu.matmul %1, %2, %cst {dimension_numbers = #tpu.dot_dimension_numbers<[1], [0], [0], [1], [0, 0, 1, 1], [], []>} : vector<8x128xf32>, vector<128x128xf32>, vector<8x128xf32> -> vector<8x128xf32>
    %c0_4 = arith.constant 0 : index
    %c0_5 = arith.constant 0 : index
    %4 = vector.load %arg3[%c0_4, %c0_5] : memref<1x128xf32, #tpu.memory_space<vmem>>, vector<1x128xf32>
    %5 = vector.broadcast %4 : vector<1x128xf32> to vector<8x128xf32>
    %6 = arith.addf %3, %5 : vector<8x128xf32>
    %c0_6 = arith.constant 0 : index
    %c0_7 = arith.constant 0 : index
    %c0_8 = arith.constant 0 : index
    %7 = vector.load %arg4[%c0_6, %c0_7, %c0_8] : memref<1x8x128xf32, #tpu.memory_space<vmem>>, vector<1x8x128xf32>
    %8 = vector.shape_cast %7 : vector<1x8x128xf32> to vector<8x128xf32>
    %9 = vector.shape_cast %6 : vector<8x128xf32> to vector<1x8x128xf32>
    tpu.vector_store %arg4[%c0_6, %c0_7, %c0_8], %9 {strides = array<i32>} : memref<1x8x128xf32, #tpu.memory_space<vmem>>, vector<1x8x128xf32>,
    return
  }
  func.func @transform_0(%arg0: i32) -> (i32, i32, i32) {
    %c0_i32 = arith.constant 0 : i32
    %c0_i32_0 = arith.constant 0 : i32
    %c0_i32_1 = arith.constant 0 : i32
    return %arg0, %c0_i32, %c0_i32_0 : i32, i32, i32
  }
  func.func @transform_1(%arg0: i32) -> (i32, i32) {
    %c0_i32 = arith.constant 0 : i32
    %c0_i32_0 = arith.constant 0 : i32
    %c0_i32_1 = arith.constant 0 : i32
    return %c0_i32, %c0_i32_0 : i32, i32
  }
  func.func @transform_2(%arg0: i32) -> (i32, i32) {
    %c0_i32 = arith.constant 0 : i32
    %c0_i32_0 = arith.constant 0 : i32
    %c0_i32_1 = arith.constant 0 : i32
    return %c0_i32, %c0_i32_0 : i32, i32
  }
  func.func @transform_3(%arg0: i32) -> (i32, i32, i32) {
    %c0_i32 = arith.constant 0 : i32
    %c0_i32_0 = arith.constant 0 : i32
    %c0_i32_1 = arith.constant 0 : i32
    return %arg0, %c0_i32, %c0_i32_0 : i32, i32, i32
  }
}

</mosaic_0001>

<llo_original>
// kernel: rnn_cell_forward.2
$region0: #{rnn_cell_forward.2}
  #allocation0 [shape = 'u32[]', space=smem, size = 0x4, offset = 0x4, fixed_abs, tag = 'smem constant byte address 0x4 - core index']
  #allocation1 [shape = 'u32[144,128]{1,0:T(1,128)}', space=vmem, size = 0x12000, scoped, tag = 'internal scratch']
  %s0 = inlined_call_operand.vmem [shape: f32[1,8,128], index: 0, kind: input, shape index: {}]
  %s1 = inlined_call_operand.hbm [shape: f32[128,128], index: 1, kind: input, shape index: {}]
  %s2 = inlined_call_operand.vmem [shape: f32[1,128], index: 2, kind: input, shape index: {}]
  %s3 = inlined_call_operand.vmem [shape: f32[1,8,128], index: 3, kind: output, shape index: {}]
  %s4 = sld [smem:[#allocation0]]
  $region26: #{rnn_cell_forward.2} parent=0
    _
  %s6 = ssub.s32 1, %s4
  %s7 = scalar_select 0, %s6, %s4
  $region1: #{rnn_cell_forward.2} parent=0
    #allocation2 [shape = 'u8[65536]{0}', space=vmem, size = 0x10000, scoped, tag = 'input window, operand 1, single buffered']
    #allocation3 [shape = 's32[1]{0}', space=sflag, size = 0x4, scoped, tag = 'scoped memory for rnn_cell_forward.2']
    %8 = vsyncpa [#allocation3], 0
    // Predicated region
    $region2: #{rnn_cell_forward.2} parent=1 // pred_check
      _
    $region3: #{rnn_cell_forward.2} parent=1 // pred_check_branch
      %10 = sbr.rel (0) target = $region5
    $region4: #{rnn_cell_forward.2} parent=1 // pred_region
      _
    $region5: #{rnn_cell_forward.2} parent=1 // pred_fallthru
      _
    // Predicated region
    $region6: #{rnn_cell_forward.2} parent=1 // pred_check
      _
    $region7: #{rnn_cell_forward.2} parent=1 // pred_check_branch
      %12 = sbr.rel (0) target = $region9
    $region8: #{rnn_cell_forward.2} parent=1 // pred_region
      %s14 = ssub.s32 2048, 2048
      %15 = vsyncadd [#allocation3], %s14
      %s16 = sshll.u32 [#allocation2], 4
      %s17 = int_to_ptr.vmem [resolvable:$true] %s16
      %22 = dma.hbm_to_vmem [thread:$0]  %s1, 2048, %s17, [#allocation3], 128, 128, 8
    $region9: #{rnn_cell_forward.2} parent=1 // pred_fallthru
      _
    // Predicated region
    $region10: #{rnn_cell_forward.2} parent=1 // pred_check
      _
    $region11: #{rnn_cell_forward.2} parent=1 // pred_check_branch
      %24 = sbr.rel (0) target = $region13
    $region12: #{rnn_cell_forward.2} parent=1 // pred_region
      _
    $region13: #{rnn_cell_forward.2} parent=1 // pred_fallthru
      _
    // Predicated region
    $region14: #{rnn_cell_forward.2} parent=1 // pred_check
      _
    $region15: #{rnn_cell_forward.2} parent=1 // pred_check_branch
      %26 = sbr.rel (0) target = $region17
    $region16: #{rnn_cell_forward.2} parent=1 // pred_region
      %27 = dma.done [#allocation3], 2048
    $region17: #{rnn_cell_forward.2} parent=1 // pred_fallthru
      _
    %v28 = vld [vmem:[%s0] sm:$0xff]
    %v29 = vld [vmem:[#allocation2] sm:$0xff]
    %v30 = vld [vmem:[#allocation2 + $0x8] sm:$0xff]
    %v31 = vld [vmem:[#allocation2 + $0x10] sm:$0xff]
    %v32 = vld [vmem:[#allocation2 + $0x18] sm:$0xff]
    %v33 = vld [vmem:[#allocation2 + $0x20] sm:$0xff]
    %v34 = vld [vmem:[#allocation2 + $0x28] sm:$0xff]
    %v35 = vld [vmem:[#allocation2 + $0x30] sm:$0xff]
    %v36 = vld [vmem:[#allocation2 + $0x38] sm:$0xff]
    %v37 = vld [vmem:[#allocation2 + $0x40] sm:$0xff]
    %v38 = vld [vmem:[#allocation2 + $0x48] sm:$0xff]
    %v39 = vld [vmem:[#allocation2 + $0x50] sm:$0xff]
    %v40 = vld [vmem:[#allocation2 + $0x58] sm:$0xff]
    %v41 = vld [vmem:[#allocation2 + $0x60] sm:$0xff]
    %v42 = vld [vmem:[#allocation2 + $0x68] sm:$0xff]
    %v43 = vld [vmem:[#allocation2 + $0x70] sm:$0xff]
    %v44 = vld [vmem:[#allocation2 + $0x78] sm:$0xff]
    %v45 = vld [vmem:[%s2] sm:$0x1]
    %v47 = vlaneseq
    %v48 = vshrl.u32 %v47, 7
    %v49 = vsub.s32 0, %v48
    %v50 = vrot.slane %v45, %v49
    %52 = vmatprep.subr.mxu0 0.0
    %53 = vmatpush1.msra.mxu0 %v44
    %54 = vmatprep.subr.mxu0 0.0
    %55 = vmatpush1.msra.mxu0 %v43
    %56 = vmatprep.subr.mxu0 0.0
    %57 = vmatpush1.msra.mxu0 %v42
    %58 = vmatprep.subr.mxu0 0.0
    %59 = vmatpush1.msra.mxu0 %v41
    %60 = vmatprep.subr.mxu0 0.0
    %61 = vmatpush1.msra.mxu0 %v40
    %62 = vmatprep.subr.mxu0 0.0
    %63 = vmatpush1.msra.mxu0 %v39
    %64 = vmatprep.subr.mxu0 0.0
    %65 = vmatpush1.msra.mxu0 %v38
    %66 = vmatprep.subr.mxu0 0.0
    %67 = vmatpush1.msra.mxu0 %v37
    %68 = vmatprep.subr.mxu0 0.0
    %69 = vmatpush1.msra.mxu0 %v36
    %70 = vmatprep.subr.mxu0 0.0
    %71 = vmatpush1.msra.mxu0 %v35
    %72 = vmatprep.subr.mxu0 0.0
    %73 = vmatpush1.msra.mxu0 %v34
    %74 = vmatprep.subr.mxu0 0.0
    %75 = vmatpush1.msra.mxu0 %v33
    %76 = vmatprep.subr.mxu0 0.0
    %77 = vmatpush1.msra.mxu0 %v32
    %78 = vmatprep.subr.mxu0 0.0
    %79 = vmatpush1.msra.mxu0 %v31
    %80 = vmatprep.subr.mxu0 0.0
    %81 = vmatpush1.msra.mxu0 %v30
    %82 = vmatprep.subr.mxu0 0.0
    %83 = vmatpush1.msra.mxu0 %v29
    %84 = vmatprep.subr.mxu0 0.0
    %85 = vmatpush2.msra.mxu0 0.0
    %86 = vmatprep.subr.mxu0 0.0
    %87 = vmatpush2.msra.mxu0 0.0
    %88 = vmatprep.subr.mxu0 0.0
    %89 = vmatpush2.msra.mxu0 0.0
    %90 = vmatprep.subr.mxu0 0.0
    %91 = vmatpush2.msra.mxu0 0.0
    %92 = vmatprep.subr.mxu0 0.0
    %93 = vmatpush2.msra.mxu0 0.0
    %94 = vmatprep.subr.mxu0 0.0
    %95 = vmatpush2.msra.mxu0 0.0
    %96 = vmatprep.subr.mxu0 0.0
    %97 = vmatpush2.msra.mxu0 0.0
    %98 = vmatprep.subr.mxu0 0.0
    %99 = vmatpush2.msra.mxu0 0.0
    %100 = vmatprep.subr.mxu0 0.0
    %101 = vmatpush2.msra.mxu0 0.0
    %102 = vmatprep.subr.mxu0 0.0
    %103 = vmatpush2.msra.mxu0 0.0
    %104 = vmatprep.subr.mxu0 0.0
    %105 = vmatpush2.msra.mxu0 0.0
    %106 = vmatprep.subr.mxu0 0.0
    %107 = vmatpush2.msra.mxu0 0.0
    %108 = vmatprep.subr.mxu0 0.0
    %109 = vmatpush2.msra.mxu0 0.0
    %110 = vmatprep.subr.mxu0 0.0
    %111 = vmatpush2.msra.mxu0 0.0
    %112 = vmatprep.subr.mxu0 0.0
    %113 = vmatpush2.msra.mxu0 0.0
    %114 = vmatprep.subr.mxu0 0.0
    %115 = vmatpush2.msra.mxu0 0.0
    %116 = vmatprep.mubr.f32.mxu0 0.0
    %117 = vmatmul.mubr.f32.gmra.mxu0 %v28
    %v118 = vpop.f32.mrf.mxu0
    %v119 = vadd.f32 %v50, %v118
    %v120 = vpop.f32.mrf.mxu0
    %121 = vdwg.mxu0
    %122 = vst [vmem:[%s3] sm:$0xff] %v119
    // Predicated region
    $region18: #{rnn_cell_forward.2} parent=1 // pred_check
      _
    $region19: #{rnn_cell_forward.2} parent=1 // pred_check_branch
      %124 = sbr.rel (0) target = $region21
    $region20: #{rnn_cell_forward.2} parent=1 // pred_region
      _
    $region21: #{rnn_cell_forward.2} parent=1 // pred_fallthru
      _
    // Predicated region
    $region22: #{rnn_cell_forward.2} parent=1 // pred_check
      _
    $region23: #{rnn_cell_forward.2} parent=1 // pred_check_branch
      %126 = sbr.rel (0) target = $region25
    $region24: #{rnn_cell_forward.2} parent=1 // pred_region
      _
    $region25: #{rnn_cell_forward.2} parent=1 // pred_fallthru
      _
    %127 = vsyncpa [#allocation3], 1

// kernel: rnn_cell_forward.3
$region0: #{rnn_cell_forward.3}
  #allocation0 [shape = 'u32[]', space=smem, size = 0x4, offset = 0x4, fixed_abs, tag = 'smem constant byte address 0x4 - core index']
  #allocation1 [shape = 'u32[144,128]{1,0:T(1,128)}', space=vmem, size = 0x12000, scoped, tag = 'internal scratch']
  #allocation2 [shape = 'f32[8,128]{1,0:T(8,128)}', space=vmem, size = 0x1000, scoped, tag = 'scratch operand']
  %s0 = inlined_call_operand.vmem [shape: f32[1,8,128], index: 0, kind: input, shape index: {}]
  %s1 = inlined_call_operand.vmem [shape: f32[128,128], index: 1, kind: input, shape index: {}]
  %s2 = inlined_call_operand.vmem [shape: f32[8,128], index: 2, kind: input, shape index: {}]
  %s3 = inlined_call_operand.vmem [shape: f32[1,8,128], index: 3, kind: output, shape index: {}]
  %s4 = sld [smem:[#allocation0]]
  $region26: #{rnn_cell_forward.3} parent=0
    _
  %s6 = ssub.s32 1, %s4
  %s7 = scalar_select 0, %s6, %s4
  // Predicated region
  $region2: #{rnn_cell_forward.3} parent=0 // pred_check
    _
  $region3: #{rnn_cell_forward.3} parent=0 // pred_check_branch
    %9 = sbr.rel (0) target = $region5
  $region4: #{rnn_cell_forward.3} parent=0 // pred_region
    _
  $region5: #{rnn_cell_forward.3} parent=0 // pred_fallthru
    _
  // Predicated region
  $region6: #{rnn_cell_forward.3} parent=0 // pred_check
    _
  $region7: #{rnn_cell_forward.3} parent=0 // pred_check_branch
    %11 = sbr.rel (0) target = $region9
  $region8: #{rnn_cell_forward.3} parent=0 // pred_region
    _
  $region9: #{rnn_cell_forward.3} parent=0 // pred_fallthru
    _
  // Predicated region
  $region10: #{rnn_cell_forward.3} parent=0 // pred_check
    _
  $region11: #{rnn_cell_forward.3} parent=0 // pred_check_branch
    %13 = sbr.rel (0) target = $region13
  $region12: #{rnn_cell_forward.3} parent=0 // pred_region
    _
  $region13: #{rnn_cell_forward.3} parent=0 // pred_fallthru
    _
  %p14 = scmp.eq.s32.totalorder 0, 0
  // Predicated region
  $region14: #{rnn_cell_forward.3} parent=0 // pred_check
    %p15 = pneg %p14
  $region15: #{rnn_cell_forward.3} parent=0 // pred_check_branch
    %17 = sbr.rel (%p15) target = $region17
  $region16: #{rnn_cell_forward.3} parent=0 // pred_region
    %v18 = vld [vmem:[%s2] sm:$0xff]
    %19 = vst [vmem:[#allocation2] sm:$0xff] %v18
  $region17: #{rnn_cell_forward.3} parent=0 // pred_fallthru
    _
  %v20 = vld [vmem:[#allocation2] sm:$0xff]
  %v21 = vld [vmem:[%s1] sm:$0xff]
  %v22 = vld [vmem:[%s1 + $0x8] sm:$0xff]
  %v23 = vld [vmem:[%s1 + $0x10] sm:$0xff]
  %v24 = vld [vmem:[%s1 + $0x18] sm:$0xff]
  %v25 = vld [vmem:[%s1 + $0x20] sm:$0xff]
  %v26 = vld [vmem:[%s1 + $0x28] sm:$0xff]
  %v27 = vld [vmem:[%s1 + $0x30] sm:$0xff]
  %v28 = vld [vmem:[%s1 + $0x38] sm:$0xff]
  %v29 = vld [vmem:[%s1 + $0x40] sm:$0xff]
  %v30 = vld [vmem:[%s1 + $0x48] sm:$0xff]
  %v31 = vld [vmem:[%s1 + $0x50] sm:$0xff]
  %v32 = vld [vmem:[%s1 + $0x58] sm:$0xff]
  %v33 = vld [vmem:[%s1 + $0x60] sm:$0xff]
  %v34 = vld [vmem:[%s1 + $0x68] sm:$0xff]
  %v35 = vld [vmem:[%s1 + $0x70] sm:$0xff]
  %v36 = vld [vmem:[%s1 + $0x78] sm:$0xff]
  %37 = vmatprep.subr.mxu0 0.0
  %38 = vmatpush1.msra.mxu0 %v36
  %39 = vmatprep.subr.mxu0 0.0
  %40 = vmatpush1.msra.mxu0 %v35
  %41 = vmatprep.subr.mxu0 0.0
  %42 = vmatpush1.msra.mxu0 %v34
  %43 = vmatprep.subr.mxu0 0.0
  %44 = vmatpush1.msra.mxu0 %v33
  %45 = vmatprep.subr.mxu0 0.0
  %46 = vmatpush1.msra.mxu0 %v32
  %47 = vmatprep.subr.mxu0 0.0
  %48 = vmatpush1.msra.mxu0 %v31
  %49 = vmatprep.subr.mxu0 0.0
  %50 = vmatpush1.msra.mxu0 %v30
  %51 = vmatprep.subr.mxu0 0.0
  %52 = vmatpush1.msra.mxu0 %v29
  %53 = vmatprep.subr.mxu0 0.0
  %54 = vmatpush1.msra.mxu0 %v28
  %55 = vmatprep.subr.mxu0 0.0
  %56 = vmatpush1.msra.mxu0 %v27
  %57 = vmatprep.subr.mxu0 0.0
  %58 = vmatpush1.msra.mxu0 %v26
  %59 = vmatprep.subr.mxu0 0.0
  %60 = vmatpush1.msra.mxu0 %v25
  %61 = vmatprep.subr.mxu0 0.0
  %62 = vmatpush1.msra.mxu0 %v24
  %63 = vmatprep.subr.mxu0 0.0
  %64 = vmatpush1.msra.mxu0 %v23
  %65 = vmatprep.subr.mxu0 0.0
  %66 = vmatpush1.msra.mxu0 %v22
  %67 = vmatprep.subr.mxu0 0.0
  %68 = vmatpush1.msra.mxu0 %v21
  %69 = vmatprep.subr.mxu0 0.0
  %70 = vmatpush2.msra.mxu0 0.0
  %71 = vmatprep.subr.mxu0 0.0
  %72 = vmatpush2.msra.mxu0 0.0
  %73 = vmatprep.subr.mxu0 0.0
  %74 = vmatpush2.msra.mxu0 0.0
  %75 = vmatprep.subr.mxu0 0.0
  %76 = vmatpush2.msra.mxu0 0.0
  %77 = vmatprep.subr.mxu0 0.0
  %78 = vmatpush2.msra.mxu0 0.0
  %79 = vmatprep.subr.mxu0 0.0
  %80 = vmatpush2.msra.mxu0 0.0
  %81 = vmatprep.subr.mxu0 0.0
  %82 = vmatpush2.msra.mxu0 0.0
  %83 = vmatprep.subr.mxu0 0.0
  %84 = vmatpush2.msra.mxu0 0.0
  %85 = vmatprep.subr.mxu0 0.0
  %86 = vmatpush2.msra.mxu0 0.0
  %87 = vmatprep.subr.mxu0 0.0
  %88 = vmatpush2.msra.mxu0 0.0
  %89 = vmatprep.subr.mxu0 0.0
  %90 = vmatpush2.msra.mxu0 0.0
  %91 = vmatprep.subr.mxu0 0.0
  %92 = vmatpush2.msra.mxu0 0.0
  %93 = vmatprep.subr.mxu0 0.0
  %94 = vmatpush2.msra.mxu0 0.0
  %95 = vmatprep.subr.mxu0 0.0
  %96 = vmatpush2.msra.mxu0 0.0
  %97 = vmatprep.subr.mxu0 0.0
  %98 = vmatpush2.msra.mxu0 0.0
  %99 = vmatprep.subr.mxu0 0.0
  %100 = vmatpush2.msra.mxu0 0.0
  %101 = vmatprep.mubr.f32.mxu0 0.0
  %102 = vmatmul.mubr.f32.gmra.mxu0 %v20
  %v103 = vpop.f32.mrf.mxu0
  %v104 = vadd.f32 0.0, %v103
  %v105 = vpop.f32.mrf.mxu0
  %106 = vdwg.mxu0
  %v107 = vld [vmem:[%s0] sm:$0xff]
  %v108 = vadd.f32 %v107, %v104
  %v109 = vtanh.pop %v108
  %110 = vst [vmem:[#allocation2] sm:$0xff] %v109
  %111 = vst [vmem:[%s3] sm:$0xff] %v109
  // Predicated region
  $region18: #{rnn_cell_forward.3} parent=0 // pred_check
    _
  $region19: #{rnn_cell_forward.3} parent=0 // pred_check_branch
    %113 = sbr.rel (0) target = $region21
  $region20: #{rnn_cell_forward.3} parent=0 // pred_region
    _
  $region21: #{rnn_cell_forward.3} parent=0 // pred_fallthru
    _
  // Predicated region
  $region22: #{rnn_cell_forward.3} parent=0 // pred_check
    _
  $region23: #{rnn_cell_forward.3} parent=0 // pred_check_branch
    %115 = sbr.rel (0) target = $region25
  $region24: #{rnn_cell_forward.3} parent=0 // pred_region
    _
  $region25: #{rnn_cell_forward.3} parent=0 // pred_fallthru
    _

</llo_original>
